<compile_context>
chip_gen: v7x
topology: tpu7x:2x2x1
jax: 0.10.0
libtpu: 0.0.40
codegen_flags: <defaults>
</compile_context>

<pallas_src>
import functools

import jax
import jax.numpy as jnp
from jax.experimental import pallas as pl
from jax.experimental.pallas import tpu as pltpu


_LANE = 128

# Per-generation (block_bytes, vmem_limit_bytes).
#   live VMEM ~= 2 arrays (in + out) x 2 buffers x block_bytes
#   v5e: 4 MiB blocks -> 16 MiB live (128 MiB physical)
#   v6e: 8 MiB blocks -> 32 MiB live (128 MiB physical)
#   v7x: 8 MiB blocks -> 32 MiB live, limit kept under the 64 MiB physical VMEM
_GEN_BUDGET = {
    5: (4 * 1024 * 1024, 32 * 1024 * 1024),
    6: (8 * 1024 * 1024, 64 * 1024 * 1024),
    7: (8 * 1024 * 1024, 48 * 1024 * 1024),
}
_DEFAULT_BUDGET = (4 * 1024 * 1024, 32 * 1024 * 1024)


def _tpu_generation() -> int:
    try:
        kind = jax.devices()[0].device_kind.lower()
    except Exception:  # no devices visible at trace time -> conservative default
        return 0
    if "v7" in kind or "7x" in kind:
        return 7
    if "v6" in kind:
        return 6
    if "v5" in kind:
        return 5
    if "v4" in kind:
        return 4
    return 0


def _sublane_multiple(dtype) -> int:
    # Packed sublane tiling: f32 -> 8, bf16/f16 -> 16, int8/fp8 -> 32.
    return max(8, 32 // jnp.dtype(dtype).itemsize)


def _grad_tanh_kernel(x_ref, o_ref, *, compute_dtype):
    # 1 - tanh(x)^2 : EUP tanh + VPU mul/sub; DMA-bound.
    t = jnp.tanh(x_ref[...].astype(compute_dtype))
    one = jnp.asarray(1.0, compute_dtype)
    o_ref[...] = (one - t * t).astype(o_ref.dtype)


def _grad_tanh_jnp(x, dtype):
    t = jnp.tanh(x.astype(jnp.float32))
    return (1.0 - t * t).astype(dtype)


def grad_tanh(x: jax.Array) -> jax.Array:
    """Pallas TPU implementation of grad_tanh.forward: returns 1 - tanh(x)**2."""
    orig_shape = x.shape
    dtype = x.dtype
    itemsize = jnp.dtype(dtype).itemsize

    gen = _tpu_generation()
    block_bytes, vmem_limit = _GEN_BUDGET.get(gen, _DEFAULT_BUDGET)

    # bf16-native math on v6e/v7x (bf16 VPU/EUP); f32 upcast elsewhere (v5e has
    # no bf16 vector/transcendental units) and for all non-bf16 dtypes.
    if dtype == jnp.bfloat16 and gen >= 6:
        compute_dtype = jnp.bfloat16
    else:
        compute_dtype = jnp.float32

    flat = x.reshape(-1)
    n = flat.shape[0]
    if n == 0:
        return x

    # Split into a 128-aligned bulk (Pallas kernel) and a tiny tail (plain jnp).
    # This avoids the whole-array pad + slice HBM round trips for irregular n.
    bulk_n = (n // _LANE) * _LANE
    if bulk_n == 0:
        # Fewer than 128 elements: not worth a kernel launch.
        return _grad_tanh_jnp(flat, dtype).reshape(orig_shape)

    bulk = flat[:bulk_n]

    # Wide lane-dense last dim: largest multiple of 128 (<=4096) dividing the
    # bulk length -> long contiguous DMAs, unmasked full-width stores.
    lanes = _LANE
    for cand in (4096, 2048, 1024, 512, 256):
        if bulk_n % cand == 0:
            lanes = cand
            break
    rows = bulk_n // lanes

    # Row tile sized from the per-generation block budget, rounded to the
    # packed-sublane multiple.
    sub = _sublane_multiple(dtype)
    tile = max(sub, (block_bytes // (lanes * itemsize)) // sub * sub)
    if tile >= rows:
        tile = rows  # single block along rows (block == full extent is legal)
        if gen >= 7 and rows >= 2 * sub:
            # v7x has 2 TensorCores: keep >= 2 steps on the "parallel" axis so
            # both cores get work instead of collapsing to grid=(1,).
            tile = -(-(rows // 2) // sub) * sub
    grid = (pl.cdiv(rows, tile),)

    x2d = bulk.reshape(rows, lanes)

    kernel = functools.partial(_grad_tanh_kernel, compute_dtype=compute_dtype)

    out2d = pl.pallas_call(
        kernel,
        out_shape=jax.ShapeDtypeStruct((rows, lanes), dtype),
        grid=grid,
        in_specs=[pl.BlockSpec((tile, lanes), lambda i: (i, 0))],
        out_specs=pl.BlockSpec((tile, lanes), lambda i: (i, 0)),
        compiler_params=pltpu.CompilerParams(
            dimension_semantics=("parallel",),
            vmem_limit_bytes=vmem_limit),
        cost_estimate=pl.CostEstimate(
            flops=3 * bulk_n,
            transcendentals=bulk_n,
            bytes_accessed=2 * bulk_n * itemsize),
    )(x2d)

    out_flat = out2d.reshape(-1)
    if bulk_n != n:
        tail_out = _grad_tanh_jnp(flat[bulk_n:], dtype)
        out_flat = jnp.concatenate([out_flat, tail_out])
    return out_flat.reshape(orig_shape)


if __name__ == "__main__":
    key = jax.random.PRNGKey(0)

    # Primary check: small NCHW activation, 128-aligned size.
    x = jax.random.normal(key, (2, 4, 16, 16), dtype=jnp.float32)
    out = grad_tanh(x)
    jax.block_until_ready(out)
    ref = 1.0 - jnp.tanh(x) ** 2
    assert out.shape == x.shape and out.dtype == x.dtype
    assert jnp.allclose(out, ref, atol=1e-5, rtol=1e-5)

    # Irregular size: exercises the bulk-kernel + jnp-tail path (no pad/slice).
    x2 = jax.random.normal(jax.random.PRNGKey(1), (2085,), dtype=jnp.float32)
    out2 = grad_tanh(x2)
    jax.block_until_ready(out2)
    ref2 = 1.0 - jnp.tanh(x2) ** 2
    assert out2.shape == x2.shape and out2.dtype == x2.dtype
    assert jnp.allclose(out2, ref2, atol=1e-5, rtol=1e-5)

    print("KERNEL_OK")
</pallas_src>

<mosaic_0001>
module attributes {stable_mosaic.version = 11 : i64} {
  func.func @_grad_tanh_kernel(%arg0: i32, %arg1: memref<1x2048xf32, #tpu.memory_space<vmem>>, %arg2: memref<1x2048xf32, #tpu.memory_space<vmem>>) attributes {dimension_semantics = [#tpu.dimension_semantics<parallel>], iteration_bounds = array<i64: 1>, scalar_prefetch = 0 : i64, scratch_operands = 0 : i64, tpu.core_type = #tpu.core_type<tc>, window_params = [{transform_indices = @transform_0, window_bounds = array<i64: 1, 2048>}, {transform_indices = @transform_1, window_bounds = array<i64: 1, 2048>}]} {
    %c0 = arith.constant 0 : index
    %c0_0 = arith.constant 0 : index
    %0 = vector.load %arg1[%c0, %c0_0] : memref<1x2048xf32, #tpu.memory_space<vmem>>, vector<1x2048xf32>
    %1 = math.tanh %0 : vector<1x2048xf32>
    %2 = arith.mulf %1, %1 : vector<1x2048xf32>
    %cst = arith.constant 1.000000e+00 : f32
    %3 = vector.broadcast %cst : f32 to vector<1x2048xf32>
    %4 = arith.subf %3, %2 : vector<1x2048xf32>
    %c0_1 = arith.constant 0 : index
    %c0_2 = arith.constant 0 : index
    %5 = vector.load %arg2[%c0_1, %c0_2] : memref<1x2048xf32, #tpu.memory_space<vmem>>, vector<1x2048xf32>
    tpu.vector_store %arg2[%c0_1, %c0_2], %4 {strides = array<i32>} : memref<1x2048xf32, #tpu.memory_space<vmem>>, vector<1x2048xf32>,
    return
  }
  func.func @transform_0(%arg0: i32) -> (i32, i32) {
    %c0_i32 = arith.constant 0 : i32
    %c0_i32_0 = arith.constant 0 : i32
    return %arg0, %c0_i32 : i32, i32
  }
  func.func @transform_1(%arg0: i32) -> (i32, i32) {
    %c0_i32 = arith.constant 0 : i32
    %c0_i32_0 = arith.constant 0 : i32
    return %arg0, %c0_i32 : i32, i32
  }
}

</mosaic_0001>

<llo_original>
// kernel: tpu_custom_call.1
$region0: #{tpu_custom_call.1}
  #allocation0 [shape = 'u32[]', space=smem, size = 0x4, offset = 0x4, fixed_abs, tag = 'smem constant byte address 0x4 - core index']
  #allocation1 [shape = 'u32[144,128]{1,0:T(1,128)}', space=vmem, size = 0x12000, scoped, tag = 'internal scratch']
  %s0 = inlined_call_operand.hbm [shape: f32[1,2048], index: 0, kind: input, shape index: {}]
  %s1 = inlined_call_operand.hbm [shape: f32[1,2048], index: 1, kind: output, shape index: {}]
  %s2 = sld [smem:[#allocation0]]
  $region18: #{tpu_custom_call.1} parent=0
    _
  %s4 = ssub.s32 1, %s2
  %s5 = scalar_select 0, %s4, %s2
  $region1: #{tpu_custom_call.1} parent=0
    #allocation2 [shape = 'u8[8192]{0}', space=vmem, size = 0x2000, scoped, tag = 'input window, operand 0, single buffered']
    #allocation3 [shape = 's32[1]{0}', space=sflag, size = 0x4, scoped, tag = 'scoped memory for tpu_custom_call.1']
    #allocation4 [shape = 's32[1]{0}', space=sflag, size = 0x4, scoped, tag = 'scoped memory for tpu_custom_call.1']
    #allocation5 [shape = 'u8[8192]{0}', space=vmem, size = 0x2000, scoped, tag = 'output window, operand 0, single buffered']
    %6 = vsyncpa [#allocation3], 0
    %7 = vsyncpa [#allocation4], 0
    // Predicated region
    $region2: #{tpu_custom_call.1} parent=1 // pred_check
      _
    $region3: #{tpu_custom_call.1} parent=1 // pred_check_branch
      %9 = sbr.rel (0) target = $region5
    $region4: #{tpu_custom_call.1} parent=1 // pred_region
      %s11 = ssub.s32 256, 256
      %12 = vsyncadd [#allocation3], %s11
      %s14 = sshll.u32 [#allocation2], 4
      %s15 = int_to_ptr.vmem [resolvable:$true] %s14
      %17 = dma.hbm_to_vmem [thread:$0]  %s0, 256, %s15, [#allocation3]
    $region5: #{tpu_custom_call.1} parent=1 // pred_fallthru
      _
    // Predicated region
    $region6: #{tpu_custom_call.1} parent=1 // pred_check
      _
    $region7: #{tpu_custom_call.1} parent=1 // pred_check_branch
      %19 = sbr.rel (0) target = $region9
    $region8: #{tpu_custom_call.1} parent=1 // pred_region
      %20 = dma.done [#allocation3], 256
    $region9: #{tpu_custom_call.1} parent=1 // pred_fallthru
      _
    %v21 = vld [vmem:[#allocation2] sm:$0xff]
    %v22 = vld [vmem:[#allocation2 + $0x8] sm:$0xff]
    %v23 = vtanh.pop %v21
    %v24 = vtanh.pop %v22
    %v25 = vmul.f32 %v23, %v23
    %v26 = vmul.f32 %v24, %v24
    %v27 = vsub.f32 1.0, %v25
    %v28 = vsub.f32 1.0, %v26
    %29 = vst [vmem:[#allocation5] sm:$0xff] %v27
    %30 = vst [vmem:[#allocation5 + $0x8] sm:$0xff] %v28
    // Predicated region
    $region10: #{tpu_custom_call.1} parent=1 // pred_check
      _
    $region11: #{tpu_custom_call.1} parent=1 // pred_check_branch
      %32 = sbr.rel (0) target = $region13
    $region12: #{tpu_custom_call.1} parent=1 // pred_region
      %s34 = ssub.s32 256, 256
      %35 = vsyncadd [#allocation4], %s34
      %s37 = sshll.u32 [#allocation5], 4
      %s38 = int_to_ptr.vmem [resolvable:$true] %s37
      %40 = dma.vmem_to_hbm [thread:$0]  %s38, 256, %s1, [#allocation4]
    $region13: #{tpu_custom_call.1} parent=1 // pred_fallthru
      _
    // Predicated region
    $region14: #{tpu_custom_call.1} parent=1 // pred_check
      _
    $region15: #{tpu_custom_call.1} parent=1 // pred_check_branch
      %42 = sbr.rel (0) target = $region17
    $region16: #{tpu_custom_call.1} parent=1 // pred_region
      %43 = dma.done [#allocation4], 256
    $region17: #{tpu_custom_call.1} parent=1 // pred_fallthru
      _
    %44 = vsyncpa [#allocation3], 1
    %45 = vsyncpa [#allocation4], 1

</llo_original>
